<compile_context>
chip_gen: v6e
topology: v6e:2x2x1
jax: 0.10.0
libtpu: 0.0.40
codegen_flags: <defaults>
</compile_context>

<pallas_src>
import functools

import jax
import jax.numpy as jnp
from jax.experimental import pallas as pl
from jax.experimental.pallas import tpu as pltpu


def _round_up(a, b):
    return (a + b - 1) // b * b


def _sigmoid(x):
    # explicit form (exp + divide) to keep every op trivially Mosaic-lowerable
    return 1.0 / (1.0 + jnp.exp(-x))


def _erf(x):
    # Abramowitz & Stegun 7.1.26 polynomial erf, max abs error ~1.5e-7 (f32-ok).
    a1, a2, a3 = 0.254829592, -0.284496736, 1.421413741
    a4, a5, p = -1.453152027, 1.061405429, 0.3275911
    s = jnp.where(x < 0.0, -1.0, 1.0)
    ax = jnp.abs(x)
    t = 1.0 / (1.0 + p * ax)
    poly = ((((a5 * t + a4) * t + a3) * t + a2) * t + a1) * t
    return s * (1.0 - poly * jnp.exp(-ax * ax))


# --------------------------------------------------------------------------
# Generic tiled row-mean: mean over the last axis of a 2-D array.
# Used for the channel pooling (mean over T*V) and temporal pooling (mean over V).
# --------------------------------------------------------------------------
def _row_mean_kernel(x_ref, out_ref, *, inv_count, cols, ctile, mask_cols):
    j = pl.program_id(1)                         # reduction (column) axis, last

    @pl.when(j == 0)
    def _init():
        out_ref[...] = jnp.zeros_like(out_ref)

    xb = x_ref[...].astype(jnp.float32)
    if mask_cols:                                # only emitted for ragged tails
        col = jax.lax.broadcasted_iota(jnp.int32, xb.shape, 1) + j * ctile
        xb = jnp.where(col < cols, xb, 0.0)
    out_ref[...] += jnp.sum(xb, axis=1, keepdims=True)

    @pl.when(j == pl.num_programs(1) - 1)
    def _finalize():
        out_ref[...] *= inv_count                # divide by TRUE count


_BLOCK_BYTES = 4 * 1024 * 1024                   # per-input-block byte target


def _row_mean(x2d):
    """Mean over the last axis of (R, Cc), tiled & pipelined.  Returns (R,) f32."""
    R, Cc = x2d.shape
    ctile = Cc if Cc <= 8192 else 2048           # full width (no mask) when it fits
    mask_cols = (Cc % ctile) != 0
    rtile = max(8, min(_round_up(R, 8),
                       _round_up(max(1, _BLOCK_BYTES // (4 * ctile)), 8)))
    grid = (pl.cdiv(R, rtile), pl.cdiv(Cc, ctile))
    out = pl.pallas_call(
        functools.partial(_row_mean_kernel, inv_count=1.0 / Cc,
                          cols=Cc, ctile=ctile, mask_cols=mask_cols),
        out_shape=jax.ShapeDtypeStruct((R, 1), jnp.float32),
        grid=grid,
        in_specs=[pl.BlockSpec((rtile, ctile), lambda i, j: (i, j))],
        out_specs=pl.BlockSpec((rtile, 1), lambda i, j: (i, 0)),
        compiler_params=pltpu.CompilerParams(
            dimension_semantics=("parallel", "arbitrary"),
            vmem_limit_bytes=32 * 1024 * 1024),
    )(x2d)
    return out[:, 0]


# --------------------------------------------------------------------------
# Spatial branch: out[n, v] = sigmoid( sum_c w[c] * mean_t x[n,c,t,v] + b )
# fused into a single pass over x (conv weights folded into the reduction).
# --------------------------------------------------------------------------
def _spatial_kernel(x_ref, w_ref, b_ref, out_ref, *, inv_t):
    t = pl.program_id(1)                         # time (reduction) axis, last

    @pl.when(t == 0)
    def _init():
        out_ref[...] = jnp.zeros_like(out_ref)

    xt = x_ref[...].astype(jnp.float32)          # (C, t_tile, V)
    wv = w_ref[...]                              # (C, 1, 1) per-channel conv weight
    s = jnp.sum(xt * wv, axis=0)                 # (t_tile, V): weighted channel sum
    out_ref[...] += jnp.sum(s, axis=0, keepdims=True)   # (1, V)

    @pl.when(t == pl.num_programs(1) - 1)
    def _finalize():
        out_ref[...] = _sigmoid(out_ref[...] * inv_t + b_ref[...])


def _spatial_path(x, ws, bs):
    N, C, T, V = x.shape
    if T % 8 == 0:
        t_tile = max(c for c in (128, 64, 32, 16, 8) if T % c == 0)
    else:
        t_tile = T                               # one full-T block per n, no padding
    grid = (N, T // t_tile)
    w3 = ws.reshape(C, 1, 1).astype(jnp.float32)
    b2 = jnp.reshape(bs, (1, 1)).astype(jnp.float32)
    out = pl.pallas_call(
        functools.partial(_spatial_kernel, inv_t=1.0 / T),
        out_shape=jax.ShapeDtypeStruct((N, 1, V), jnp.float32),
        grid=grid,
        in_specs=[
            pl.BlockSpec((None, C, t_tile, V), lambda n, t: (n, 0, t, 0)),
            pl.BlockSpec((C, 1, 1), lambda n, t: (0, 0, 0)),
            pl.BlockSpec((1, 1), lambda n, t: (0, 0)),
        ],
        out_specs=pl.BlockSpec((None, 1, V), lambda n, t: (n, 0, 0)),
        compiler_params=pltpu.CompilerParams(
            dimension_semantics=("parallel", "arbitrary"),
            vmem_limit_bytes=32 * 1024 * 1024),
    )(x, w3, b2)
    return out.reshape(N, 1, 1, V)


# --------------------------------------------------------------------------
# Temporal branch: mean over V (tiled row-mean), then a 9-tap conv over T
# realized with shifted lane slices (no im2col), channel-summed, + bias, sigmoid.
# --------------------------------------------------------------------------
def _temporal_conv_kernel(x_ref, w_ref, b_ref, out_ref, *, k_taps, t_out):
    xw = x_ref[...]                              # (C, t_out + k_taps - 1), zero-padded
    wk = w_ref[...]                              # (C, k_taps)
    acc = jnp.zeros((xw.shape[0], t_out), jnp.float32)
    for k in range(k_taps):                      # statically unrolled lane shifts
        acc = acc + xw[:, k:k + t_out] * wk[:, k:k + 1]
    z = jnp.sum(acc, axis=0, keepdims=True) + b_ref[...]   # sum over channels, (1, T)
    out_ref[...] = _sigmoid(z)


def _temporal_path(x, wt, bt):
    N, C, T, V = x.shape
    K = wt.shape[1]
    pad = (K - 1) // 2
    xm = _row_mean(x.reshape(N * C * T, V)).reshape(N, C, T)   # mean over V (heavy)
    xp = jnp.pad(xm, ((0, 0), (0, 0), (pad, pad)))             # tiny halo pad (V× smaller than x)
    Tp = T + 2 * pad
    out = pl.pallas_call(
        functools.partial(_temporal_conv_kernel, k_taps=K, t_out=T),
        out_shape=jax.ShapeDtypeStruct((N, 1, T), jnp.float32),
        grid=(N,),
        in_specs=[
            pl.BlockSpec((None, C, Tp), lambda n: (n, 0, 0)),
            pl.BlockSpec((C, K), lambda n: (0, 0)),
            pl.BlockSpec((1, 1), lambda n: (0, 0)),
        ],
        out_specs=pl.BlockSpec((None, 1, T), lambda n: (n, 0, 0)),
        compiler_params=pltpu.CompilerParams(
            dimension_semantics=("parallel",),
            vmem_limit_bytes=32 * 1024 * 1024),
    )(xp, wt.astype(jnp.float32), jnp.reshape(bt, (1, 1)).astype(jnp.float32))
    return out.reshape(N, 1, T, 1)


# --------------------------------------------------------------------------
# Channel branch: tiled pooling over (T,V), then a tiny fused kernel for
# grouped conv -> training-mode BN (folded affine) -> exact GELU -> grouped conv
# -> sigmoid, with channels on sublanes and batch on lanes.
# --------------------------------------------------------------------------
def _channel_mixer_kernel(pe_ref, po_ref, prm_ref, oe_ref, oo_ref, *, inv_n, eps):
    prm = prm_ref[...]                           # (C/2, 8) packed per-group params
    w1a, w1b = prm[:, 0:1], prm[:, 1:2]
    gamma, beta = prm[:, 2:3], prm[:, 3:4]
    w2e, w2o = prm[:, 4:5], prm[:, 5:6]
    b2e, b2o = prm[:, 6:7], prm[:, 7:8]
    # grouped 1x1 conv (groups=C/2): group j mixes input channels 2j, 2j+1.
    # Its bias is omitted: the training-mode BatchNorm below cancels it exactly.
    y = w1a * pe_ref[...] + w1b * po_ref[...]    # (C/2, N)
    mean = jnp.sum(y, axis=1, keepdims=True) * inv_n
    d = y - mean
    var = jnp.sum(d * d, axis=1, keepdims=True) * inv_n
    # BN folded into a single per-channel affine: yh = a*y + c.
    a = gamma * jax.lax.rsqrt(var + eps)
    c = beta - mean * a
    yh = y * a + c
    g = 0.5 * yh * (1.0 + _erf(yh * 0.7071067811865476))      # exact GELU
    # grouped 1x1 conv back up (C/2 -> C): channel 2j uses w2e, 2j+1 uses w2o.
    oe_ref[...] = _sigmoid(w2e * g + b2e)
    oo_ref[...] = _sigmoid(w2o * g + b2o)


def _channel_path(x, w1, b1, gamma, beta, w2, b2, eps):
    N, C, T, V = x.shape
    C2 = C // 2
    del b1   # cancelled exactly by the training-mode BatchNorm that follows
    p = _row_mean(x.reshape(N * C, T * V)).reshape(N, C)       # mean over (T, V)
    pt = p.T                                                   # (C, N)
    pe, po = pt[0::2], pt[1::2]                                # (C/2, N) even/odd chans
    prm = jnp.stack([w1[:, 0], w1[:, 1], gamma, beta,
                     w2[0::2], w2[1::2], b2[0::2], b2[1::2]], axis=1)   # (C/2, 8)
    vspec = pl.BlockSpec(memory_space=pltpu.MemorySpace.VMEM)
    oe, oo = pl.pallas_call(
        functools.partial(_channel_mixer_kernel, inv_n=1.0 / N, eps=eps),
        out_shape=(jax.ShapeDtypeStruct((C2, N), jnp.float32),
                   jax.ShapeDtypeStruct((C2, N), jnp.float32)),
        in_specs=[vspec, vspec, vspec],
        out_specs=(vspec, vspec),
    )(pe.astype(jnp.float32), po.astype(jnp.float32), prm.astype(jnp.float32))
    z = jnp.stack([oe, oo], axis=1).reshape(C, N).T            # (N, C), order 2j, 2j+1
    return z.reshape(N, C, 1, 1)


def bi_inter_forward(x, params, mode):
    """Forward of Bi_Inter.  x: (N, C, T, V) float32."""
    if mode == 'channel':
        return _channel_path(x, params['w1'], params['b1'], params['gamma'],
                             params['beta'], params['w2'], params['b2'],
                             params['bn_eps'])
    elif mode == 'spatial':
        return _spatial_path(x, params['ws'], params['bs'])
    else:  # 'temporal'
        return _temporal_path(x, params['wt'], params['bt'])


if __name__ == "__main__":
    key = jax.random.PRNGKey(0)
    ks = jax.random.split(key, 11)

    N, C, T, V = 2, 4, 16, 16
    C2 = C // 2
    eps = 1e-5

    x = jax.random.normal(ks[0], (N, C, T, V), jnp.float32)

    # deterministic, PyTorch-like (kaiming-uniform bound) parameters
    b1_bound = 1.0 / (2.0 ** 0.5)                       # conv_c[0]: fan_in = 2
    w1 = jax.random.uniform(ks[1], (C2, 2), jnp.float32, -b1_bound, b1_bound)
    b1 = jax.random.uniform(ks[2], (C2,), jnp.float32, -b1_bound, b1_bound)
    gamma = jax.random.uniform(ks[3], (C2,), jnp.float32, 0.5, 1.5)
    beta = 0.1 * jax.random.normal(ks[4], (C2,), jnp.float32)
    w2 = jax.random.uniform(ks[5], (C,), jnp.float32, -1.0, 1.0)    # fan_in = 1
    b2 = jax.random.uniform(ks[6], (C,), jnp.float32, -1.0, 1.0)
    s_bound = 1.0 / (C ** 0.5)                          # conv_s: fan_in = C
    ws = jax.random.uniform(ks[7], (C,), jnp.float32, -s_bound, s_bound)
    bs = jax.random.uniform(ks[8], (), jnp.float32, -s_bound, s_bound)
    t_bound = 1.0 / ((C * 9) ** 0.5)                    # conv_t: fan_in = C*9
    wt = jax.random.uniform(ks[9], (C, 9), jnp.float32, -t_bound, t_bound)
    bt = jax.random.uniform(ks[10], (), jnp.float32, -t_bound, t_bound)

    params = dict(w1=w1, b1=b1, gamma=gamma, beta=beta, w2=w2, b2=b2,
                  ws=ws, bs=bs, wt=wt, bt=bt, bn_eps=eps)

    out_c = jax.block_until_ready(bi_inter_forward(x, params, 'channel'))
    out_s = jax.block_until_ready(bi_inter_forward(x, params, 'spatial'))
    out_t = jax.block_until_ready(bi_inter_forward(x, params, 'temporal'))

    # ---- pure-JAX references (PyTorch training-mode forward semantics) ----
    # channel
    pm = x.mean(axis=(2, 3))                                          # (N, C)
    y = (pm.reshape(N, C2, 2) * w1[None, :, :]).sum(-1) + b1[None, :]  # (N, C/2)
    m = y.mean(axis=0)
    v = ((y - m) ** 2).mean(axis=0)
    yh = (y - m) / jnp.sqrt(v + eps) * gamma[None, :] + beta[None, :]
    g = jax.nn.gelu(yh, approximate=False)
    z = g[:, :, None] * w2.reshape(C2, 2)[None] + b2.reshape(C2, 2)[None]
    ref_c = jax.nn.sigmoid(z.reshape(N, C, 1, 1))
    # spatial
    xs = x.mean(axis=2)                                               # (N, C, V)
    ref_s = jax.nn.sigmoid(jnp.einsum('ncv,c->nv', xs, ws) + bs).reshape(N, 1, 1, V)
    # temporal
    xt = x.mean(axis=3)                                               # (N, C, T)
    xtp = jnp.pad(xt, ((0, 0), (0, 0), (4, 4)))
    acc = jnp.zeros((N, T), jnp.float32) + bt
    for k in range(9):
        acc = acc + jnp.einsum('nct,c->nt', xtp[:, :, k:k + T], wt[:, k])
    ref_t = jax.nn.sigmoid(acc).reshape(N, 1, T, 1)

    assert out_c.shape == (N, C, 1, 1), out_c.shape
    assert out_s.shape == (N, 1, 1, V), out_s.shape
    assert out_t.shape == (N, 1, T, 1), out_t.shape
    for name, got, ref in (("channel", out_c, ref_c),
                           ("spatial", out_s, ref_s),
                           ("temporal", out_t, ref_t)):
        max_err = float(jnp.max(jnp.abs(got - ref)))
        assert jnp.allclose(got, ref, atol=2e-4, rtol=2e-4), (name, max_err)

    print("KERNEL_OK")
</pallas_src>

<mosaic_0001>
module attributes {stable_mosaic.version = 11 : i64} {
  func.func @_row_mean_kernel(%arg0: i32, %arg1: i32, %arg2: memref<8x256xf32, #tpu.memory_space<vmem>>, %arg3: memref<8x1xf32, #tpu.memory_space<vmem>>) attributes {dimension_semantics = [#tpu.dimension_semantics<parallel>, #tpu.dimension_semantics<arbitrary>], iteration_bounds = array<i64: 1, 1>, scalar_prefetch = 0 : i64, scratch_operands = 0 : i64, tpu.core_type = #tpu.core_type<tc>, window_params = [{transform_indices = @transform_0, window_bounds = array<i64: 8, 256>}, {transform_indices = @transform_1, window_bounds = array<i64: 8, 1>}]} {
    %c0_i32 = arith.constant 0 : i32
    %0 = arith.cmpi eq, %arg1, %c0_i32 : i32
    %1 = arith.extui %0 : i1 to i32
    %c0_i32_0 = arith.constant 0 : i32
    %2 = arith.cmpi ne, %1, %c0_i32_0 : i32
    scf.if %2 {
      %cst_8 = arith.constant 0.000000e+00 : f32
      %12 = vector.broadcast %cst_8 : f32 to vector<8x1xf32>
      %c0_9 = arith.constant 0 : index
      %c0_10 = arith.constant 0 : index
      %13 = vector.load %arg3[%c0_9, %c0_10] : memref<8x1xf32, #tpu.memory_space<vmem>>, vector<8x1xf32>
      tpu.vector_store %arg3[%c0_9, %c0_10], %12 {strides = array<i32>} : memref<8x1xf32, #tpu.memory_space<vmem>>, vector<8x1xf32>,
    } else {
    }
    %c0 = arith.constant 0 : index
    %c0_1 = arith.constant 0 : index
    %3 = vector.load %arg2[%c0, %c0_1] : memref<8x256xf32, #tpu.memory_space<vmem>>, vector<8x256xf32>
    %c0_2 = arith.constant 0 : index
    %c0_3 = arith.constant 0 : index
    %4 = vector.load %arg3[%c0_2, %c0_3] : memref<8x1xf32, #tpu.memory_space<vmem>>, vector<8x1xf32>
    %cst = arith.constant dense<0.000000e+00> : vector<8xf32>
    %5 = vector.multi_reduction <add>, %3, %cst [1] : vector<8x256xf32> to vector<8xf32>
    %6 = vector.shape_cast %5 : vector<8xf32> to vector<8x1xf32>
    %7 = arith.addf %4, %6 : vector<8x1xf32>
    %c0_4 = arith.constant 0 : index
    %c0_5 = arith.constant 0 : index
    %8 = vector.load %arg3[%c0_4, %c0_5] : memref<8x1xf32, #tpu.memory_space<vmem>>, vector<8x1xf32>
    tpu.vector_store %arg3[%c0_4, %c0_5], %7 {strides = array<i32>} : memref<8x1xf32, #tpu.memory_space<vmem>>, vector<8x1xf32>,
    %c0_i32_6 = arith.constant 0 : i32
    %9 = arith.cmpi eq, %arg1, %c0_i32_6 : i32
    %10 = arith.extui %9 : i1 to i32
    %c0_i32_7 = arith.constant 0 : i32
    %11 = arith.cmpi ne, %10, %c0_i32_7 : i32
    scf.if %11 {
      %c0_8 = arith.constant 0 : index
      %c0_9 = arith.constant 0 : index
      %12 = vector.load %arg3[%c0_8, %c0_9] : memref<8x1xf32, #tpu.memory_space<vmem>>, vector<8x1xf32>
      %cst_10 = arith.constant 3.906250e-03 : f32
      %13 = vector.broadcast %cst_10 : f32 to vector<8x1xf32>
      %14 = arith.mulf %12, %13 : vector<8x1xf32>
      %c0_11 = arith.constant 0 : index
      %c0_12 = arith.constant 0 : index
      %15 = vector.load %arg3[%c0_11, %c0_12] : memref<8x1xf32, #tpu.memory_space<vmem>>, vector<8x1xf32>
      tpu.vector_store %arg3[%c0_11, %c0_12], %14 {strides = array<i32>} : memref<8x1xf32, #tpu.memory_space<vmem>>, vector<8x1xf32>,
    } else {
    }
    return
  }
  func.func @transform_0(%arg0: i32, %arg1: i32) -> (i32, i32) {
    %c0_i32 = arith.constant 0 : i32
    return %arg0, %arg1 : i32, i32
  }
  func.func @transform_1(%arg0: i32, %arg1: i32) -> (i32, i32) {
    %c0_i32 = arith.constant 0 : i32
    %c0_i32_0 = arith.constant 0 : i32
    return %arg0, %c0_i32 : i32, i32
  }
}

</mosaic_0001>

<llo_original>
// kernel: tpu_custom_call.1
$region0: #{tpu_custom_call.1}
  #allocation0 [shape = 'u32[]', space=smem, size = 0x4, offset = 0x4, fixed_abs, tag = 'smem constant byte address 0x4 - core index']
  #allocation1 [shape = 'u32[144,128]{1,0:T(1,128)}', space=vmem, size = 0x12000, scoped, tag = 'internal scratch']
  %s0 = inlined_call_operand.hbm [shape: f32[8,256], index: 0, kind: input, shape index: {}]
  %s1 = inlined_call_operand.vmem [shape: f32[8,1], index: 1, kind: output, shape index: {}]
  %s2 = sld [smem:[#allocation0]]
  $region26: #{tpu_custom_call.1} parent=0
    _
  %s4 = ssub.s32 1, %s2
  %s5 = scalar_select 0, %s4, %s2
  $region1: #{tpu_custom_call.1} parent=0
    #allocation2 [shape = 'u8[8192]{0}', space=vmem, size = 0x2000, scoped, tag = 'input window, operand 0, single buffered']
    #allocation3 [shape = 's32[1]{0}', space=sflag, size = 0x4, scoped, tag = 'scoped memory for tpu_custom_call.1']
    %6 = vsyncpa [#allocation3], 0
    // Predicated region
    $region2: #{tpu_custom_call.1} parent=1 // pred_check
      _
    $region3: #{tpu_custom_call.1} parent=1 // pred_check_branch
      %8 = sbr.rel (0) target = $region5
    $region4: #{tpu_custom_call.1} parent=1 // pred_region
      %s10 = ssub.s32 256, 256
      %11 = vsyncadd [#allocation3], %s10
      %s13 = sshll.u32 [#allocation2], 4
      %s14 = int_to_ptr.vmem [resolvable:$true] %s13
      %16 = dma.hbm_to_vmem [thread:$0]  %s0, 256, %s14, [#allocation3]
    $region5: #{tpu_custom_call.1} parent=1 // pred_fallthru
      _
    // Predicated region
    $region6: #{tpu_custom_call.1} parent=1 // pred_check
      _
    $region7: #{tpu_custom_call.1} parent=1 // pred_check_branch
      %18 = sbr.rel (0) target = $region9
    $region8: #{tpu_custom_call.1} parent=1 // pred_region
      %19 = dma.done [#allocation3], 256
    $region9: #{tpu_custom_call.1} parent=1 // pred_fallthru
      _
    %p20 = scmp.eq.s32.totalorder 0, 0
    // Predicated region
    $region10: #{tpu_custom_call.1} parent=1 // pred_check
      %p21 = pneg %p20
    $region11: #{tpu_custom_call.1} parent=1 // pred_check_branch
      %23 = sbr.rel (%p21) target = $region13
    $region12: #{tpu_custom_call.1} parent=1 // pred_region
      %vm24 = vcmask 7168
      %25 = vst.msk [vmem:[%s1] sm:$0xff] %vm24, 0.0
    $region13: #{tpu_custom_call.1} parent=1 // pred_fallthru
      _
    %v26 = vld [vmem:[#allocation2] sm:$0xff]
    %v27 = vld [vmem:[#allocation2 + $0x8] sm:$0xff]
    %v28 = vld [vmem:[%s1] sm:$0xff]
    %v29 = vadd.f32 %v26, %v27
    %30 = vadd.xlane.f32.xlu0 %v29
    %v31 = vpop.xlane.xlu0 %30
    %v32 = vadd.f32 %v28, %v31
    %vm33 = vcmask 7168
    %34 = vst.msk [vmem:[%s1] sm:$0xff] %vm33, %v32
    // Predicated region
    $region14: #{tpu_custom_call.1} parent=1 // pred_check
      %p35 = pneg %p20
    $region15: #{tpu_custom_call.1} parent=1 // pred_check_branch
      %37 = sbr.rel (%p35) target = $region17
    $region16: #{tpu_custom_call.1} parent=1 // pred_region
      %v38 = vld [vmem:[%s1] sm:$0xff]
      %v39 = vmul.f32 %v38, 0.00390625
      %40 = vst.msk [vmem:[%s1] sm:$0xff] %vm33, %v39
    $region17: #{tpu_custom_call.1} parent=1 // pred_fallthru
      _
    // Predicated region
    $region18: #{tpu_custom_call.1} parent=1 // pred_check
      _
    $region19: #{tpu_custom_call.1} parent=1 // pred_check_branch
      %42 = sbr.rel (0) target = $region21
    $region20: #{tpu_custom_call.1} parent=1 // pred_region
      _
    $region21: #{tpu_custom_call.1} parent=1 // pred_fallthru
      _
    // Predicated region
    $region22: #{tpu_custom_call.1} parent=1 // pred_check
      _
    $region23: #{tpu_custom_call.1} parent=1 // pred_check_branch
      %44 = sbr.rel (0) target = $region25
    $region24: #{tpu_custom_call.1} parent=1 // pred_region
      _
    $region25: #{tpu_custom_call.1} parent=1 // pred_fallthru
      _
    %45 = vsyncpa [#allocation3], 1

</llo_original>
